<compile_context>
chip_gen: v7x
topology: tpu7x:2x2x1
jax: 0.10.0
libtpu: 0.0.40
codegen_flags: <defaults>
</compile_context>

<pallas_src>
import functools

import jax
import jax.numpy as jnp
from jax.experimental import pallas as pl
from jax.experimental.pallas import tpu as pltpu

LANE = 128  # TPU lane width; all feature dims are padded to this


def _round_up(v, m):
    return (v + m - 1) // m * m


def _pad2d(arr, rows, cols, dtype):
    out = jnp.zeros((rows, cols), dtype)
    return out.at[: arr.shape[0], : arr.shape[1]].set(arr.astype(dtype))


# ----------------------------- Pallas kernel ------------------------------

def _fused_gcn_kernel(a_ref, x_ref, w1_ref, b1_ref, w2_ref, b2_ref,
                      o_ref, g_scratch, *, tile_m):
    phase = pl.program_id(0)   # 0: build g = relu((A@X)@W1 + b1) @ W2 ; 1: z = A@g + b2
    i = pl.program_id(1)       # row-tile index

    @pl.when(phase == 0)
    def _layer1():
        # (A_tile @ X) @ W1 + b1  -- cheaper order since F_in < F_out (MXU, f32 acc)
        ax = jnp.dot(a_ref[...], x_ref[...], preferred_element_type=jnp.float32)
        h = jnp.dot(ax.astype(jnp.bfloat16), w1_ref[...],
                    preferred_element_type=jnp.float32)
        h = jnp.maximum(h + b1_ref[...], 0.0)           # bias + ReLU in f32 (VPU)
        # TODO(synk): F.dropout(p=0.5) in training mode not implemented; eval-mode identity.
        # Pre-multiply by W2 now so phase 1 is a single A @ g matmul per tile.
        g = jnp.dot(h.astype(jnp.bfloat16), w2_ref[...],
                    preferred_element_type=jnp.float32)
        row0 = pl.multiple_of(i * tile_m, tile_m)
        g_scratch[pl.ds(row0, tile_m), :] = g.astype(g_scratch.dtype)
        o_ref[...] = jnp.zeros_like(o_ref)              # defined value; overwritten in phase 1

    @pl.when(phase == 1)
    def _layer2():
        z = jnp.dot(a_ref[...], g_scratch[...], preferred_element_type=jnp.float32)
        o_ref[...] = (z + b2_ref[...]).astype(o_ref.dtype)


def fused_gcn_forward(a_hat, x, w1, b1, w2, b2):
    """z = A_hat @ (relu(A_hat @ x @ w1 + b1) @ w2) + b2, fused in one pallas_call."""
    n, f_in = x.shape
    hidden = w1.shape[1]

    tile_m = min(512, _round_up(n, LANE))   # big row tiles; 128-aligned
    n_pad = _round_up(n, tile_m)
    f_in_pad = _round_up(f_in, LANE)
    hid_pad = _round_up(hidden, LANE)

    # Zero-pad to lane-dense shapes; MXU operands in bf16, biases stay f32.
    a_pad = _pad2d(a_hat, n_pad, n_pad, jnp.bfloat16)
    x_pad = _pad2d(x, n_pad, f_in_pad, jnp.bfloat16)
    w1_pad = _pad2d(w1, f_in_pad, hid_pad, jnp.bfloat16)
    w2_pad = _pad2d(w2, hid_pad, hid_pad, jnp.bfloat16)
    b1_pad = _pad2d(b1.reshape(1, -1), 1, hid_pad, jnp.float32)
    b2_pad = _pad2d(b2.reshape(1, -1), 1, hid_pad, jnp.float32)

    grid = (2, n_pad // tile_m)
    kernel = functools.partial(_fused_gcn_kernel, tile_m=tile_m)

    z_pad = pl.pallas_call(
        kernel,
        out_shape=jax.ShapeDtypeStruct((n_pad, hid_pad), jnp.float32),
        grid_spec=pltpu.PrefetchScalarGridSpec(
            num_scalar_prefetch=0,
            grid=grid,
            in_specs=[
                pl.BlockSpec((tile_m, n_pad), lambda p, i: (i, 0)),     # A_hat row tile
                pl.BlockSpec((n_pad, f_in_pad), lambda p, i: (0, 0)),   # X (resident)
                pl.BlockSpec((f_in_pad, hid_pad), lambda p, i: (0, 0)),  # W1
                pl.BlockSpec((1, hid_pad), lambda p, i: (0, 0)),        # b1
                pl.BlockSpec((hid_pad, hid_pad), lambda p, i: (0, 0)),  # W2
                pl.BlockSpec((1, hid_pad), lambda p, i: (0, 0)),        # b2
            ],
            out_specs=pl.BlockSpec((tile_m, hid_pad), lambda p, i: (i, 0)),
            scratch_shapes=[pltpu.VMEM((n_pad, hid_pad), jnp.bfloat16)],  # staged h @ W2
        ),
        compiler_params=pltpu.CompilerParams(
            dimension_semantics=("arbitrary", "arbitrary")),
    )(a_pad, x_pad, w1_pad, b1_pad, w2_pad, b2_pad)

    return z_pad[:n, :hidden]


# ------------------------------- glue (JAX) --------------------------------

def normalized_adjacency(edge_index, num_nodes):
    """Dense D^-1/2 (A + I) D^-1/2 from a [2, E] edge_index (made symmetric)."""
    src, dst = edge_index[0], edge_index[1]
    a = jnp.zeros((num_nodes, num_nodes), jnp.float32)
    a = a.at[src, dst].set(1.0)
    a = a.at[dst, src].set(1.0)
    a = jnp.minimum(a + jnp.eye(num_nodes, dtype=jnp.float32), 1.0)  # self loops
    deg = a.sum(axis=1)
    d_inv_sqrt = jax.lax.rsqrt(deg)
    return a * d_inv_sqrt[:, None] * d_inv_sqrt[None, :]


def glorot(key, shape):
    limit = jnp.sqrt(6.0 / (shape[0] + shape[1]))
    return jax.random.uniform(key, shape, jnp.float32, -limit, limit)


def init_params(key, in_features, hidden=16):
    k1, k2 = jax.random.split(key)
    return {
        "w1": glorot(k1, (in_features, hidden)),
        "b1": jnp.zeros((hidden,), jnp.float32),
        "w2": glorot(k2, (hidden, hidden)),
        "b2": jnp.zeros((hidden,), jnp.float32),
    }


def net_forward(params, x, edge_index):
    """Matches Net.forward: relu(conv1(x)) -> dropout (eval: identity) -> conv2."""
    n = x.shape[0]
    a_hat = normalized_adjacency(edge_index, n)
    return fused_gcn_forward(a_hat, x,
                             params["w1"], params["b1"],
                             params["w2"], params["b2"])


# --------------------------------- main ------------------------------------

if __name__ == "__main__":
    num_nodes = 64
    in_features = 8
    num_edges = 128

    key = jax.random.PRNGKey(0)
    kx, ke, kp = jax.random.split(key, 3)

    x = jax.random.normal(kx, (num_nodes, in_features), jnp.float32)
    edge_index = jax.random.randint(ke, (2, num_edges), 0, num_nodes, jnp.int32)
    params = init_params(kp, in_features, hidden=16)

    z = net_forward(params, x, edge_index)
    z = jax.block_until_ready(z)
    assert z.shape == (num_nodes, 16) and z.dtype == jnp.float32

    # Pure-JAX f32 reference (loose tolerance: kernel feeds bf16 into the MXU).
    a_hat = normalized_adjacency(edge_index, num_nodes)
    h_ref = jnp.maximum(a_hat @ (x @ params["w1"]) + params["b1"], 0.0)
    z_ref = a_hat @ (h_ref @ params["w2"]) + params["b2"]
    assert jnp.allclose(z, z_ref, atol=1e-1, rtol=1e-1)

    print("KERNEL_OK")
</pallas_src>

<mosaic_0001>
module attributes {stable_mosaic.version = 11 : i64} {
  func.func @_fused_gcn_kernel(%arg0: i32, %arg1: i32, %arg2: memref<128x128xbf16, #tpu.memory_space<vmem>>, %arg3: memref<128x128xbf16, #tpu.memory_space<vmem>>, %arg4: memref<128x128xbf16, #tpu.memory_space<vmem>>, %arg5: memref<1x128xf32, #tpu.memory_space<vmem>>, %arg6: memref<128x128xbf16, #tpu.memory_space<vmem>>, %arg7: memref<1x128xf32, #tpu.memory_space<vmem>>, %arg8: memref<128x128xf32, #tpu.memory_space<vmem>>, %arg9: memref<128x128xbf16, #tpu.memory_space<vmem>>) attributes {dimension_semantics = [#tpu.dimension_semantics<arbitrary>, #tpu.dimension_semantics<arbitrary>], iteration_bounds = array<i64: 2, 1>, scalar_prefetch = 0 : i64, scratch_operands = 1 : i64, tpu.core_type = #tpu.core_type<tc>, window_params = [{transform_indices = @transform_0, window_bounds = array<i64: 128, 128>}, {pipeline_mode = #tpu.pipeline_mode<synchronous>, transform_indices = @transform_1, window_bounds = array<i64: 128, 128>}, {pipeline_mode = #tpu.pipeline_mode<synchronous>, transform_indices = @transform_2, window_bounds = array<i64: 128, 128>}, {pipeline_mode = #tpu.pipeline_mode<synchronous>, transform_indices = @transform_3, window_bounds = array<i64: 1, 128>}, {pipeline_mode = #tpu.pipeline_mode<synchronous>, transform_indices = @transform_4, window_bounds = array<i64: 128, 128>}, {pipeline_mode = #tpu.pipeline_mode<synchronous>, transform_indices = @transform_5, window_bounds = array<i64: 1, 128>}, {transform_indices = @transform_6, window_bounds = array<i64: 128, 128>}]} {
    %c0_i32 = arith.constant 0 : i32
    %0 = arith.cmpi eq, %arg0, %c0_i32 : i32
    %1 = arith.extui %0 : i1 to i32
    %c0_i32_0 = arith.constant 0 : i32
    %2 = arith.cmpi ne, %1, %c0_i32_0 : i32
    scf.if %2 {
      %c0 = arith.constant 0 : index
      %c0_2 = arith.constant 0 : index
      %6 = vector.load %arg2[%c0, %c0_2] : memref<128x128xbf16, #tpu.memory_space<vmem>>, vector<128x128xbf16>
      %c0_3 = arith.constant 0 : index
      %c0_4 = arith.constant 0 : index
      %7 = vector.load %arg3[%c0_3, %c0_4] : memref<128x128xbf16, #tpu.memory_space<vmem>>, vector<128x128xbf16>
      %cst = arith.constant dense<0.000000e+00> : vector<128x128xf32>
      %8 = tpu.matmul %6, %7, %cst {dimension_numbers = #tpu.dot_dimension_numbers<[1], [0], [0], [1], [0, 0, 1, 1], [], []>} : vector<128x128xbf16>, vector<128x128xbf16>, vector<128x128xf32> -> vector<128x128xf32>
      %9 = arith.truncf %8 : vector<128x128xf32> to vector<128x128xbf16>
      %c0_5 = arith.constant 0 : index
      %c0_6 = arith.constant 0 : index
      %10 = vector.load %arg4[%c0_5, %c0_6] : memref<128x128xbf16, #tpu.memory_space<vmem>>, vector<128x128xbf16>
      %cst_7 = arith.constant dense<0.000000e+00> : vector<128x128xf32>
      %11 = tpu.matmul %9, %10, %cst_7 {dimension_numbers = #tpu.dot_dimension_numbers<[1], [0], [0], [1], [0, 0, 1, 1], [], []>} : vector<128x128xbf16>, vector<128x128xbf16>, vector<128x128xf32> -> vector<128x128xf32>
      %c0_8 = arith.constant 0 : index
      %c0_9 = arith.constant 0 : index
      %12 = vector.load %arg5[%c0_8, %c0_9] : memref<1x128xf32, #tpu.memory_space<vmem>>, vector<1x128xf32>
      %13 = vector.broadcast %12 : vector<1x128xf32> to vector<128x128xf32>
      %14 = arith.addf %11, %13 : vector<128x128xf32>
      %cst_10 = arith.constant 0.000000e+00 : f32
      %15 = vector.broadcast %cst_10 : f32 to vector<128x128xf32>
      %16 = arith.maximumf %14, %15 : vector<128x128xf32>
      %17 = arith.truncf %16 : vector<128x128xf32> to vector<128x128xbf16>
      %c0_11 = arith.constant 0 : index
      %c0_12 = arith.constant 0 : index
      %18 = vector.load %arg6[%c0_11, %c0_12] : memref<128x128xbf16, #tpu.memory_space<vmem>>, vector<128x128xbf16>
      %cst_13 = arith.constant dense<0.000000e+00> : vector<128x128xf32>
      %19 = tpu.matmul %17, %18, %cst_13 {dimension_numbers = #tpu.dot_dimension_numbers<[1], [0], [0], [1], [0, 0, 1, 1], [], []>} : vector<128x128xbf16>, vector<128x128xbf16>, vector<128x128xf32> -> vector<128x128xf32>
      %c128_i32 = arith.constant 128 : i32
      %20 = arith.muli %arg1, %c128_i32 : i32
      %21 = tpu.assume_multiple %20, 128 : i32
      %22 = arith.truncf %19 : vector<128x128xf32> to vector<128x128xbf16>
      %23 = arith.index_cast %21 : i32 to index
      %c0_14 = arith.constant 0 : index
      %24 = vector.load %arg9[%23, %c0_14] : memref<128x128xbf16, #tpu.memory_space<vmem>>, vector<128x128xbf16>
      tpu.vector_store %arg9[%23, %c0_14], %22 {strides = array<i32>} : memref<128x128xbf16, #tpu.memory_space<vmem>>, vector<128x128xbf16>,
      %cst_15 = arith.constant 0.000000e+00 : f32
      %25 = vector.broadcast %cst_15 : f32 to vector<128x128xf32>
      %c0_16 = arith.constant 0 : index
      %c0_17 = arith.constant 0 : index
      %26 = vector.load %arg8[%c0_16, %c0_17] : memref<128x128xf32, #tpu.memory_space<vmem>>, vector<128x128xf32>
      tpu.vector_store %arg8[%c0_16, %c0_17], %25 {strides = array<i32>} : memref<128x128xf32, #tpu.memory_space<vmem>>, vector<128x128xf32>,
    } else {
    }
    %c1_i32 = arith.constant 1 : i32
    %3 = arith.cmpi eq, %arg0, %c1_i32 : i32
    %4 = arith.extui %3 : i1 to i32
    %c0_i32_1 = arith.constant 0 : i32
    %5 = arith.cmpi ne, %4, %c0_i32_1 : i32
    scf.if %5 {
      %c0 = arith.constant 0 : index
      %c0_2 = arith.constant 0 : index
      %6 = vector.load %arg2[%c0, %c0_2] : memref<128x128xbf16, #tpu.memory_space<vmem>>, vector<128x128xbf16>
      %c0_3 = arith.constant 0 : index
      %c0_4 = arith.constant 0 : index
      %7 = vector.load %arg9[%c0_3, %c0_4] : memref<128x128xbf16, #tpu.memory_space<vmem>>, vector<128x128xbf16>
      %cst = arith.constant dense<0.000000e+00> : vector<128x128xf32>
      %8 = tpu.matmul %6, %7, %cst {dimension_numbers = #tpu.dot_dimension_numbers<[1], [0], [0], [1], [0, 0, 1, 1], [], []>} : vector<128x128xbf16>, vector<128x128xbf16>, vector<128x128xf32> -> vector<128x128xf32>
      %c0_5 = arith.constant 0 : index
      %c0_6 = arith.constant 0 : index
      %9 = vector.load %arg7[%c0_5, %c0_6] : memref<1x128xf32, #tpu.memory_space<vmem>>, vector<1x128xf32>
      %10 = vector.broadcast %9 : vector<1x128xf32> to vector<128x128xf32>
      %11 = arith.addf %8, %10 : vector<128x128xf32>
      %c0_7 = arith.constant 0 : index
      %c0_8 = arith.constant 0 : index
      %12 = vector.load %arg8[%c0_7, %c0_8] : memref<128x128xf32, #tpu.memory_space<vmem>>, vector<128x128xf32>
      tpu.vector_store %arg8[%c0_7, %c0_8], %11 {strides = array<i32>} : memref<128x128xf32, #tpu.memory_space<vmem>>, vector<128x128xf32>,
    } else {
    }
    return
  }
  func.func @transform_0(%arg0: i32, %arg1: i32) -> (i32, i32) {
    %c0_i32 = arith.constant 0 : i32
    %c0_i32_0 = arith.constant 0 : i32
    return %arg1, %c0_i32 : i32, i32
  }
  func.func @transform_1(%arg0: i32, %arg1: i32) -> (i32, i32) {
    %c0_i32 = arith.constant 0 : i32
    %c0_i32_0 = arith.constant 0 : i32
    %c0_i32_1 = arith.constant 0 : i32
    return %c0_i32, %c0_i32_0 : i32, i32
  }
  func.func @transform_2(%arg0: i32, %arg1: i32) -> (i32, i32) {
    %c0_i32 = arith.constant 0 : i32
    %c0_i32_0 = arith.constant 0 : i32
    %c0_i32_1 = arith.constant 0 : i32
    return %c0_i32, %c0_i32_0 : i32, i32
  }
  func.func @transform_3(%arg0: i32, %arg1: i32) -> (i32, i32) {
    %c0_i32 = arith.constant 0 : i32
    %c0_i32_0 = arith.constant 0 : i32
    %c0_i32_1 = arith.constant 0 : i32
    return %c0_i32, %c0_i32_0 : i32, i32
  }
  func.func @transform_4(%arg0: i32, %arg1: i32) -> (i32, i32) {
    %c0_i32 = arith.constant 0 : i32
    %c0_i32_0 = arith.constant 0 : i32
    %c0_i32_1 = arith.constant 0 : i32
    return %c0_i32, %c0_i32_0 : i32, i32
  }
  func.func @transform_5(%arg0: i32, %arg1: i32) -> (i32, i32) {
    %c0_i32 = arith.constant 0 : i32
    %c0_i32_0 = arith.constant 0 : i32
    %c0_i32_1 = arith.constant 0 : i32
    return %c0_i32, %c0_i32_0 : i32, i32
  }
  func.func @transform_6(%arg0: i32, %arg1: i32) -> (i32, i32) {
    %c0_i32 = arith.constant 0 : i32
    %c0_i32_0 = arith.constant 0 : i32
    return %arg1, %c0_i32 : i32, i32
  }
}

</mosaic_0001>

<llo_original>
// kernel: tpu_custom_call.1
$region0: #{tpu_custom_call.1}
  #allocation0 [shape = 'u32[]', space=smem, size = 0x4, offset = 0x4, fixed_abs, tag = 'smem constant byte address 0x4 - core index']
  #allocation1 [shape = 'u32[144,128]{1,0:T(1,128)}', space=vmem, size = 0x12000, scoped, tag = 'internal scratch']
  #allocation2 [shape = 'bf16[128,128]{1,0:T(16,128)(2,1)}', space=vmem, size = 0x8000, scoped, tag = 'scratch operand']
  %s0 = inlined_call_operand.hbm [shape: bf16[128,128], index: 0, kind: input, shape index: {}]
  %s1 = inlined_call_operand.hbm [shape: bf16[128,128], index: 1, kind: input, shape index: {}]
  %s2 = inlined_call_operand.hbm [shape: bf16[128,128], index: 2, kind: input, shape index: {}]
  %s3 = inlined_call_operand.vmem [shape: f32[1,128], index: 3, kind: input, shape index: {}]
  %s4 = inlined_call_operand.hbm [shape: bf16[128,128], index: 4, kind: input, shape index: {}]
  %s5 = inlined_call_operand.vmem [shape: f32[1,128], index: 5, kind: input, shape index: {}]
  %s6 = inlined_call_operand.hbm [shape: f32[128,128], index: 6, kind: output, shape index: {}]
  %s7 = sld [smem:[#allocation0]]
  $region81: #{tpu_custom_call.1} parent=0
    _
  %s9 = ssub.s32 1, %s7
  %s10 = scalar_select 0, %s9, %s7
  $region1: #{tpu_custom_call.1} parent=0
    #allocation3 [shape = 'u8[32768]{0}', space=vmem, size = 0x8000, scoped, tag = 'input window, operand 0, single buffered']
    #allocation4 [shape = 's32[2]{0}', space=sflag, size = 0x8, scoped, tag = 'scoped memory for tpu_custom_call.1']
    #allocation5 [shape = 's32[2]{0}', space=sflag, size = 0x8, scoped, tag = 'scoped memory for tpu_custom_call.1']
    #allocation6 [shape = 'u8[32768]{0}', space=vmem, size = 0x8000, scoped, tag = 'input window, operand 1, single buffered']
    #allocation7 [shape = 's32[1]{0}', space=sflag, size = 0x4, scoped, tag = 'scoped memory for tpu_custom_call.1']
    #allocation8 [shape = 'u8[32768]{0}', space=vmem, size = 0x8000, scoped, tag = 'input window, operand 2, single buffered']
    #allocation9 [shape = 'u8[32768]{0}', space=vmem, size = 0x8000, scoped, tag = 'input window, operand 4, single buffered']
    #allocation10 [shape = 's32[1]{0}', space=sflag, size = 0x4, scoped, tag = 'scoped memory for tpu_custom_call.1']
    #allocation11 [shape = 'u8[65536]{0}', space=vmem, size = 0x10000, scoped, tag = 'output window, operand 0, single buffered']
    %11 = vsyncpa [#allocation4], 0
    %12 = vsyncpa [#allocation7], 0
    %13 = vsyncpa [#allocation10], 0
    %14 = vsyncpa [#allocation5], 0
    loop: start=0, step=1, limit=4
    $region2: #{tpu_custom_call.1} parent=1 // loop_pre_header
      _
    $region3: #{tpu_custom_call.1} parent=1 // loop_header
      %s16 = sphi 0, %s20
      %p17 = scmp.ge.s32.totalorder %s16, 4
      %s23 = sphi 0, %s35
      %s24 = sphi 0, %s31
      %s25 = sphi 0, %s23
      %s26 = sphi 0, %s24
      %s27 = sphi 0, %s25
      %s28 = sphi 0, %s26
      %s38 = sphi 0, %s40
      %s41 = sphi 0, %s38
      %s42 = sphi 0, %s41
      %s58 = sphi 0, %s42
      %s62 = sphi 0, %s62
      %s64 = sphi 0, %s62
      %s65 = sphi 0, %s64
      %s79 = sphi 0, %s65
      %s83 = sphi 0, %s83
      %s85 = sphi 0, %s83
      %s86 = sphi 0, %s85
      %s100 = sphi 0, %s86
      %s104 = sphi 0, %s104
      %s106 = sphi 0, %s104
      %s107 = sphi 0, %s106
      %s121 = sphi 0, %s107
      %s125 = sphi 0, %s125
      %s127 = sphi 0, %s125
      %s128 = sphi 0, %s127
      %s142 = sphi 0, %s128
      %s146 = sphi 0, %s146
      %s148 = sphi 0, %s146
      %s149 = sphi 0, %s148
      %s163 = sphi 0, %s149
      %s169 = sphi 0, %s171
      %s172 = sphi 0, %s169
      %s173 = sphi 0, %s172
      %s189 = sphi 0, %s173
    $region4: #{tpu_custom_call.1} parent=1 // loop_header_branch
      %19 = sbr.rel (%p17) target = $region8
    $region5: #{tpu_custom_call.1} parent=1 // loop_body
      %s21 = ssub.s32 %s16, 1
      %s22 = ssub.s32 %s16, 2
      %s29 = sadd.s32 1, %s24
      %p30 = scmp.ge.s32.totalorder %s29, 1
      %s31 = scalar_select %p30, 0, %s29
      %s32 = sadd.s32 1, %s23
      %s33 = scalar_select %p30, %s32, %s23
      %p34 = scmp.ge.s32.totalorder %s33, 2
      %s35 = scalar_select %p34, 0, %s33
      %s36 = ssub.s32 %s24, %s31
      %p37 = scmp.eq.s32.totalorder %s36, 0
      %s39 = sadd.s32 %s38, 1
      %s40 = scalar_select %p37, %s38, %s39
      %p43 = pneg %p37
      %p44 = scmp.eq.s32.totalorder %s16, 1
      %p45 = por %p43, %p44
      %p46 = scmp.ne.s32.totalorder %s38, %s41
      %p47 = scmp.eq.s32.totalorder %s16, 0
      %p48 = por %p46, %p47
      %p49 = scmp.ne.s32.totalorder %s38, %s41
      %p50 = scmp.eq.s32.totalorder %s21, 1
      %p51 = por %p49, %p50
      %p52 = scmp.ne.s32.totalorder %s41, %s42
      %p53 = scmp.eq.s32.totalorder %s21, 0
      %p54 = por %p52, %p53
      %p55 = scmp.ne.s32.totalorder %s41, %s42
      %p56 = scmp.eq.s32.totalorder %s22, 1
      %p57 = por %p55, %p56
      %p59 = scmp.ne.s32.totalorder %s42, %s58
      %p60 = scmp.eq.s32.totalorder %s22, 0
      %p61 = por %p59, %p60
      %s63 = sadd.s32 %s62, 1
      %p66 = scmp.eq.s32.totalorder %s16, 1
      %p67 = scmp.ne.s32.totalorder %s62, %s64
      %p68 = scmp.eq.s32.totalorder %s16, 0
      %p69 = por %p67, %p68
      %p70 = scmp.ne.s32.totalorder %s62, %s64
      %p71 = scmp.eq.s32.totalorder %s21, 1
      %p72 = por %p70, %p71
      %p73 = scmp.ne.s32.totalorder %s64, %s65
      %p74 = scmp.eq.s32.totalorder %s21, 0
      %p75 = por %p73, %p74
      %p76 = scmp.ne.s32.totalorder %s64, %s65
      %p77 = scmp.eq.s32.totalorder %s22, 1
      %p78 = por %p76, %p77
      %p80 = scmp.ne.s32.totalorder %s65, %s79
      %p81 = scmp.eq.s32.totalorder %s22, 0
      %p82 = por %p80, %p81
      %s84 = sadd.s32 %s83, 1
      %p87 = scmp.eq.s32.totalorder %s16, 1
      %p88 = scmp.ne.s32.totalorder %s83, %s85
      %p89 = scmp.eq.s32.totalorder %s16, 0
      %p90 = por %p88, %p89
      %p91 = scmp.ne.s32.totalorder %s83, %s85
      %p92 = scmp.eq.s32.totalorder %s21, 1
      %p93 = por %p91, %p92
      %p94 = scmp.ne.s32.totalorder %s85, %s86
      %p95 = scmp.eq.s32.totalorder %s21, 0
      %p96 = por %p94, %p95
      %p97 = scmp.ne.s32.totalorder %s85, %s86
      %p98 = scmp.eq.s32.totalorder %s22, 1
      %p99 = por %p97, %p98
      %p101 = scmp.ne.s32.totalorder %s86, %s100
      %p102 = scmp.eq.s32.totalorder %s22, 0
      %p103 = por %p101, %p102
      %s105 = sadd.s32 %s104, 1
      %p108 = scmp.eq.s32.totalorder %s16, 1
      %p109 = scmp.ne.s32.totalorder %s104, %s106
      %p110 = scmp.eq.s32.totalorder %s16, 0
      %p111 = por %p109, %p110
      %p112 = scmp.ne.s32.totalorder %s104, %s106
      %p113 = scmp.eq.s32.totalorder %s21, 1
      %p114 = por %p112, %p113
      %p115 = scmp.ne.s32.totalorder %s106, %s107
      %p116 = scmp.eq.s32.totalorder %s21, 0
      %p117 = por %p115, %p116
      %p118 = scmp.ne.s32.totalorder %s106, %s107
      %p119 = scmp.eq.s32.totalorder %s22, 1
      %p120 = por %p118, %p119
      %p122 = scmp.ne.s32.totalorder %s107, %s121
      %p123 = scmp.eq.s32.totalorder %s22, 0
      %p124 = por %p122, %p123
      %s126 = sadd.s32 %s125, 1
      %p129 = scmp.eq.s32.totalorder %s16, 1
      %p130 = scmp.ne.s32.totalorder %s125, %s127
      %p131 = scmp.eq.s32.totalorder %s16, 0
      %p132 = por %p130, %p131
      %p133 = scmp.ne.s32.totalorder %s125, %s127
      %p134 = scmp.eq.s32.totalorder %s21, 1
      %p135 = por %p133, %p134
      %p136 = scmp.ne.s32.totalorder %s127, %s128
      %p137 = scmp.eq.s32.totalorder %s21, 0
      %p138 = por %p136, %p137
      %p139 = scmp.ne.s32.totalorder %s127, %s128
      %p140 = scmp.eq.s32.totalorder %s22, 1
      %p141 = por %p139, %p140
      %p143 = scmp.ne.s32.totalorder %s128, %s142
      %p144 = scmp.eq.s32.totalorder %s22, 0
      %p145 = por %p143, %p144
      %s147 = sadd.s32 %s146, 1
      %p150 = scmp.eq.s32.totalorder %s16, 1
      %p151 = scmp.ne.s32.totalorder %s146, %s148
      %p152 = scmp.eq.s32.totalorder %s16, 0
      %p153 = por %p151, %p152
      %p154 = scmp.ne.s32.totalorder %s146, %s148
      %p155 = scmp.eq.s32.totalorder %s21, 1
      %p156 = por %p154, %p155
      %p157 = scmp.ne.s32.totalorder %s148, %s149
      %p158 = scmp.eq.s32.totalorder %s21, 0
      %p159 = por %p157, %p158
      %p160 = scmp.ne.s32.totalorder %s148, %s149
      %p161 = scmp.eq.s32.totalorder %s22, 1
      %p162 = por %p160, %p161
      %p164 = scmp.ne.s32.totalorder %s149, %s163
      %p165 = scmp.eq.s32.totalorder %s22, 0
      %p166 = por %p164, %p165
      %s167 = ssub.s32 %s24, %s31
      %p168 = scmp.eq.s32.totalorder %s167, 0
      %s170 = sadd.s32 %s169, 1
      %s171 = scalar_select %p168, %s169, %s170
      %p174 = pneg %p168
      %p175 = scmp.eq.s32.totalorder %s16, 1
      %p176 = por %p174, %p175
      %p177 = scmp.ne.s32.totalorder %s169, %s172
      %p178 = scmp.eq.s32.totalorder %s16, 0
      %p179 = por %p177, %p178
      %p180 = scmp.ne.s32.totalorder %s169, %s172
      %p181 = scmp.eq.s32.totalorder %s21, 1
      %p182 = por %p180, %p181
      %p183 = scmp.ne.s32.totalorder %s172, %s173
      %p184 = scmp.eq.s32.totalorder %s21, 0
      %p185 = por %p183, %p184
      %p186 = scmp.ne.s32.totalorder %s172, %s173
      %p187 = scmp.eq.s32.totalorder %s22, 1
      %p188 = por %p186, %p187
      %p190 = scmp.ne.s32.totalorder %s173, %s189
      %p191 = scmp.eq.s32.totalorder %s22, 0
      %p192 = por %p190, %p191
      %p193 = scmp.le.s32.totalorder 1, %s16
      %p194 = scmp.lt.s32.totalorder %s16, 3
      %p195 = pnand %p193, %p194
      %p196 = pneg %p195
      // Predicated region
      $region9: #{tpu_custom_call.1} parent=5 // pred_check
        _
      $region10: #{tpu_custom_call.1} parent=5 // pred_check_branch
        %198 = sbr.rel (%p195) target = $region12
      $region11: #{tpu_custom_call.1} parent=5 // pred_region
        %s199 = ssub.s32 %s16, 1
        // Predicated region
        $region13: #{tpu_custom_call.1} parent=11 // pred_check
          %p200 = pneg %p54
        $region14: #{tpu_custom_call.1} parent=11 // pred_check_branch
          %202 = sbr.rel (%p200) target = $region16
        $region15: #{tpu_custom_call.1} parent=11 // pred_region
          %s203 = smul.u32 16, %s26
          %s205 = ssub.s32 1024, 1024
          %206 = vsyncadd [#allocation4], %s205
          %s207 = smul.addr %s203, 64
          %s208 = scalar_lea.hbm %s0, %s207
          %s209 = sshll.u32 [#allocation3], 4
          %s210 = int_to_ptr.vmem [resolvable:$true] %s209
          %215 = dma.hbm_to_vmem [thread:$0]  %s208, 1024, %s210, [#allocation4], 64, 64, 4
        $region16: #{tpu_custom_call.1} parent=11 // pred_fallthru
          _
        // Predicated region
        $region17: #{tpu_custom_call.1} parent=11 // pred_check
          %p216 = pneg %p75
        $region18: #{tpu_custom_call.1} parent=11 // pred_check_branch
          %218 = sbr.rel (%p216) target = $region20
        $region19: #{tpu_custom_call.1} parent=11 // pred_region
          %s220 = ssub.s32 1024, 1024
          %221 = vsyncadd [#allocation7], %s220
          %s222 = sshll.u32 [#allocation6], 4
          %s223 = int_to_ptr.vmem [resolvable:$true] %s222
          %228 = dma.hbm_to_vmem [thread:$0]  %s1, 1024, %s223, [#allocation7], 64, 64, 4
        $region20: #{tpu_custom_call.1} parent=11 // pred_fallthru
          _
        // Predicated region
        $region21: #{tpu_custom_call.1} parent=11 // pred_check
          %p229 = pneg %p96
        $region22: #{tpu_custom_call.1} parent=11 // pred_check_branch
          %231 = sbr.rel (%p229) target = $region24
        $region23: #{tpu_custom_call.1} parent=11 // pred_region
          %s233 = ssub.s32 1024, 1024
          %234 = vsyncadd [#allocation7], %s233
          %s235 = sshll.u32 [#allocation8], 4
          %s236 = int_to_ptr.vmem [resolvable:$true] %s235
          %241 = dma.hbm_to_vmem [thread:$0]  %s2, 1024, %s236, [#allocation7], 64, 64, 4
        $region24: #{tpu_custom_call.1} parent=11 // pred_fallthru
          _
        // Predicated region
        $region25: #{tpu_custom_call.1} parent=11 // pred_check
          %p242 = pneg %p117
        $region26: #{tpu_custom_call.1} parent=11 // pred_check_branch
          %244 = sbr.rel (%p242) target = $region28
        $region27: #{tpu_custom_call.1} parent=11 // pred_region
          _
        $region28: #{tpu_custom_call.1} parent=11 // pred_fallthru
          _
        // Predicated region
        $region29: #{tpu_custom_call.1} parent=11 // pred_check
          %p245 = pneg %p138
        $region30: #{tpu_custom_call.1} parent=11 // pred_check_branch
          %247 = sbr.rel (%p245) target = $region32
        $region31: #{tpu_custom_call.1} parent=11 // pred_region
          %s249 = ssub.s32 1024, 1024
          %250 = vsyncadd [#allocation10], %s249
          %s251 = sshll.u32 [#allocation9], 4
          %s252 = int_to_ptr.vmem [resolvable:$true] %s251
          %257 = dma.hbm_to_vmem [thread:$0]  %s4, 1024, %s252, [#allocation10], 64, 64, 4
        $region32: #{tpu_custom_call.1} parent=11 // pred_fallthru
          _
        // Predicated region
        $region33: #{tpu_custom_call.1} parent=11 // pred_check
          %p258 = pneg %p159
        $region34: #{tpu_custom_call.1} parent=11 // pred_check_branch
          %260 = sbr.rel (%p258) target = $region36
        $region35: #{tpu_custom_call.1} parent=11 // pred_region
          _
        $region36: #{tpu_custom_call.1} parent=11 // pred_fallthru
          _
      $region12: #{tpu_custom_call.1} parent=5 // pred_fallthru
        _
      %p261 = scmp.lt.s32.totalorder %s16, 2
      // Predicated region
      $region37: #{tpu_custom_call.1} parent=5 // pred_check
        %p262 = pneg %p261
      $region38: #{tpu_custom_call.1} parent=5 // pred_check_branch
        %264 = sbr.rel (%p262) target = $region40
      $region39: #{tpu_custom_call.1} parent=5 // pred_region
        _
      $region40: #{tpu_custom_call.1} parent=5 // pred_fallthru
        _
      %p265 = scmp.le.s32.totalorder 1, %s16
      %p266 = scmp.lt.s32.totalorder %s16, 3
      %p267 = pnand %p265, %p266
      %p268 = pneg %p267
      // Predicated region
      $region41: #{tpu_custom_call.1} parent=5 // pred_check
        _
      $region42: #{tpu_custom_call.1} parent=5 // pred_check_branch
        %270 = sbr.rel (%p267) target = $region44
      $region43: #{tpu_custom_call.1} parent=5 // pred_region
        %s271 = ssub.s32 %s16, 1
        // Predicated region
        $region45: #{tpu_custom_call.1} parent=43 // pred_check
          %p272 = pneg %p54
        $region46: #{tpu_custom_call.1} parent=43 // pred_check_branch
          %274 = sbr.rel (%p272) target = $region48
        $region47: #{tpu_custom_call.1} parent=43 // pred_region
          %275 = dma.done [#allocation4], 1024
        $region48: #{tpu_custom_call.1} parent=43 // pred_fallthru
          _
        // Predicated region
        $region49: #{tpu_custom_call.1} parent=43 // pred_check
          %p276 = pneg %p75
        $region50: #{tpu_custom_call.1} parent=43 // pred_check_branch
          %278 = sbr.rel (%p276) target = $region52
        $region51: #{tpu_custom_call.1} parent=43 // pred_region
          %279 = dma.done [#allocation7], 1024
        $region52: #{tpu_custom_call.1} parent=43 // pred_fallthru
          _
        // Predicated region
        $region53: #{tpu_custom_call.1} parent=43 // pred_check
          %p280 = pneg %p96
        $region54: #{tpu_custom_call.1} parent=43 // pred_check_branch
          %282 = sbr.rel (%p280) target = $region56
        $region55: #{tpu_custom_call.1} parent=43 // pred_region
          %283 = dma.done [#allocation7], 1024
        $region56: #{tpu_custom_call.1} parent=43 // pred_fallthru
          _
        // Predicated region
        $region57: #{tpu_custom_call.1} parent=43 // pred_check
          %p284 = pneg %p138
        $region58: #{tpu_custom_call.1} parent=43 // pred_check_branch
          %286 = sbr.rel (%p284) target = $region60
        $region59: #{tpu_custom_call.1} parent=43 // pred_region
          %287 = dma.done [#allocation10], 1024
        $region60: #{tpu_custom_call.1} parent=43 // pred_fallthru
          _
        %p288 = pneg %p54
        %p289 = pneg %p51
        %p290 = pneg %p75
        %p291 = pneg %p72
        %p292 = pneg %p96
        %p293 = pneg %p93
        %p294 = pneg %p117
        %p295 = pneg %p114
        %p296 = pneg %p138
        %p297 = pneg %p135
        %p298 = pneg %p159
        %p299 = pneg %p156
        %p300 = pneg %p185
        %p301 = pneg %p182
        %s302 = smul.u32 16, %s26
        %s303 = smul.u32 16, %s26
        %p305 = scmp.eq.s32.totalorder %s25, 0
        // Predicated region
        $region61: #{tpu_custom_call.1} parent=43 // pred_check
          %p306 = pneg %p305
        $region62: #{tpu_custom_call.1} parent=43 // pred_check_branch
          %308 = sbr.rel (%p306) target = $region64
        $region63: #{tpu_custom_call.1} parent=43 // pred_region
          %v309 = vld [vmem:[#allocation3] sm:$0xf]
          %v310 = vld [vmem:[#allocation3 + $0x4] sm:$0xf]
          %v311 = vld [vmem:[#allocation3 + $0x8] sm:$0xf]
          %v312 = vld [vmem:[#allocation3 + $0xc] sm:$0xf]
          %v313 = vld [vmem:[#allocation3 + $0x10] sm:$0xf]
          %v314 = vld [vmem:[#allocation3 + $0x14] sm:$0xf]
          %v315 = vld [vmem:[#allocation3 + $0x18] sm:$0xf]
          %v316 = vld [vmem:[#allocation3 + $0x1c] sm:$0xf]
          %v317 = vld [vmem:[#allocation3 + $0x20] sm:$0xf]
          %v318 = vld [vmem:[#allocation3 + $0x24] sm:$0xf]
          %v319 = vld [vmem:[#allocation3 + $0x28] sm:$0xf]
          %v320 = vld [vmem:[#allocation3 + $0x2c] sm:$0xf]
          %v321 = vld [vmem:[#allocation3 + $0x30] sm:$0xf]
          %v322 = vld [vmem:[#allocation3 + $0x34] sm:$0xf]
          %v323 = vld [vmem:[#allocation3 + $0x38] sm:$0xf]
          %v324 = vld [vmem:[#allocation3 + $0x3c] sm:$0xf]
          %v325 = vld [vmem:[#allocation6] sm:$0xf]
          %v326 = vld [vmem:[#allocation6 + $0x4] sm:$0xf]
          %v327 = vld [vmem:[#allocation6 + $0x8] sm:$0xf]
          %v328 = vld [vmem:[#allocation6 + $0xc] sm:$0xf]
          %v329 = vld [vmem:[#allocation6 + $0x10] sm:$0xf]
          %v330 = vld [vmem:[#allocation6 + $0x14] sm:$0xf]
          %v331 = vld [vmem:[#allocation6 + $0x18] sm:$0xf]
          %v332 = vld [vmem:[#allocation6 + $0x1c] sm:$0xf]
          %v333 = vld [vmem:[#allocation6 + $0x20] sm:$0xf]
          %v334 = vld [vmem:[#allocation6 + $0x24] sm:$0xf]
          %v335 = vld [vmem:[#allocation6 + $0x28] sm:$0xf]
          %v336 = vld [vmem:[#allocation6 + $0x2c] sm:$0xf]
          %v337 = vld [vmem:[#allocation6 + $0x30] sm:$0xf]
          %v338 = vld [vmem:[#allocation6 + $0x34] sm:$0xf]
          %v339 = vld [vmem:[#allocation6 + $0x38] sm:$0xf]
          %v340 = vld [vmem:[#allocation6 + $0x3c] sm:$0xf]
          %v357 = vunpack.c.l.b16 %v309
          %v358 = vunpack.c.l.b16 %v310
          %v359 = vunpack.c.l.b16 %v311
          %v360 = vunpack.c.l.b16 %v312
          %v361 = vunpack.c.l.b16 %v313
          %v362 = vunpack.c.l.b16 %v314
          %v363 = vunpack.c.l.b16 %v315
          %v364 = vunpack.c.l.b16 %v316
          %v365 = vunpack.c.l.b16 %v317
          %v366 = vunpack.c.l.b16 %v318
          %v367 = vunpack.c.l.b16 %v319
          %v368 = vunpack.c.l.b16 %v320
          %v369 = vunpack.c.l.b16 %v321
          %v370 = vunpack.c.l.b16 %v322
          %v371 = vunpack.c.l.b16 %v323
          %v372 = vunpack.c.l.b16 %v324
          %v373 = vpack.c.b16 %v358, %v357
          %v374 = vpack.c.b16 %v360, %v359
          %v375 = vpack.c.b16 %v362, %v361
          %v376 = vpack.c.b16 %v364, %v363
          %v377 = vpack.c.b16 %v366, %v365
          %v378 = vpack.c.b16 %v368, %v367
          %v379 = vpack.c.b16 %v370, %v369
          %v380 = vpack.c.b16 %v372, %v371
          %v405 = vunpack.c.l.b16 %v325
          %v406 = vunpack.c.l.b16 %v326
          %v407 = vunpack.c.l.b16 %v327
          %v408 = vunpack.c.l.b16 %v328
          %v409 = vunpack.c.l.b16 %v329
          %v410 = vunpack.c.l.b16 %v330
          %v411 = vunpack.c.l.b16 %v331
          %v412 = vunpack.c.l.b16 %v332
          %v413 = vunpack.c.l.b16 %v333
          %v414 = vunpack.c.l.b16 %v334
          %v415 = vunpack.c.l.b16 %v335
          %v416 = vunpack.c.l.b16 %v336
          %v417 = vunpack.c.l.b16 %v337
          %v418 = vunpack.c.l.b16 %v338
          %v419 = vunpack.c.l.b16 %v339
          %v420 = vunpack.c.l.b16 %v340
          %v421 = vpack.c.b16 %v406, %v405
          %v422 = vpack.c.b16 %v408, %v407
          %v423 = vpack.c.b16 %v410, %v409
          %v424 = vpack.c.b16 %v412, %v411
          %v425 = vpack.c.b16 %v414, %v413
          %v426 = vpack.c.b16 %v416, %v415
          %v427 = vpack.c.b16 %v418, %v417
          %v428 = vpack.c.b16 %v420, %v419
          %437 = vmatprep.subr.bf16.mxu0 0
          %438 = vmatpush1.bf16.msra.mxu0 %v421
          %439 = vmatprep.subr.bf16.mxu0 0
          %440 = vmatpush1.bf16.msra.mxu0 %v422
          %441 = vmatprep.subr.bf16.mxu0 0
          %442 = vmatpush1.bf16.msra.mxu0 %v423
          %443 = vmatprep.subr.bf16.mxu0 0
          %444 = vmatpush1.bf16.msra.mxu0 %v424
          %445 = vmatprep.subr.bf16.mxu0 0
          %446 = vmatpush1.bf16.msra.mxu0 %v425
          %447 = vmatprep.subr.bf16.mxu0 0
          %448 = vmatpush1.bf16.msra.mxu0 %v426
          %449 = vmatprep.subr.bf16.mxu0 0
          %450 = vmatpush1.bf16.msra.mxu0 %v427
          %451 = vmatprep.subr.bf16.mxu0 0
          %452 = vmatpush1.bf16.msra.mxu0 %v428
          %453 = vmatprep.subr.bf16.mxu0 0
          %454 = vmatpush1.bf16.msra.mxu0 0
          %455 = vmatprep.subr.bf16.mxu0 0
          %456 = vmatpush1.bf16.msra.mxu0 0
          %457 = vmatprep.subr.bf16.mxu0 0
          %458 = vmatpush1.bf16.msra.mxu0 0
          %459 = vmatprep.subr.bf16.mxu0 0
          %460 = vmatpush1.bf16.msra.mxu0 0
          %461 = vmatprep.subr.bf16.mxu0 0
          %462 = vmatpush1.bf16.msra.mxu0 0
          %463 = vmatprep.subr.bf16.mxu0 0
          %464 = vmatpush1.bf16.msra.mxu0 0
          %465 = vmatprep.subr.bf16.mxu0 0
          %466 = vmatpush1.bf16.msra.mxu0 0
          %467 = vmatprep.subr.bf16.mxu0 0
          %468 = vmatpush1.bf16.msra.mxu0 0
          %469 = vmatprep.mubr.bf16.mxu0 0
          %470 = vmatmul.mubr.bf16.gmra.mrb[0].mxu0 %v373
          %v471 = vpop.f32.mrb[0].mxu0
          %v472 = vadd.f32 0.0, %v471
          %v473 = vpop.f32.mrb[0].mxu0
          %v474 = vpop.f32.mrb[0].mxu0
          %v475 = vadd.f32 0.0, %v474
          %v476 = vpop.f32.mrb[0].mxu0
          %477 = vmatprep.mubr.bf16.mxu0 0
          %478 = vmatmul.mubr.bf16.gmra.mrb[0].mxu0 %v374
          %v479 = vpop.f32.mrb[0].mxu0
          %v480 = vadd.f32 0.0, %v479
          %v481 = vpop.f32.mrb[0].mxu0
          %v482 = vpop.f32.mrb[0].mxu0
          %v483 = vadd.f32 0.0, %v482
          %v484 = vpop.f32.mrb[0].mxu0
          %485 = vmatprep.mubr.bf16.mxu0 0
          %486 = vmatmul.mubr.bf16.gmra.mrb[0].mxu0 %v375
          %v487 = vpop.f32.mrb[0].mxu0
          %v488 = vadd.f32 0.0, %v487
          %v489 = vpop.f32.mrb[0].mxu0
          %v490 = vpop.f32.mrb[0].mxu0
          %v491 = vadd.f32 0.0, %v490
          %v492 = vpop.f32.mrb[0].mxu0
          %493 = vmatprep.mubr.bf16.mxu0 0
          %494 = vmatmul.mubr.bf16.gmra.mrb[0].mxu0 %v376
          %v495 = vpop.f32.mrb[0].mxu0
          %v496 = vadd.f32 0.0, %v495
          %v497 = vpop.f32.mrb[0].mxu0
          %v498 = vpop.f32.mrb[0].mxu0
          %v499 = vadd.f32 0.0, %v498
          %v500 = vpop.f32.mrb[0].mxu0
          %501 = vmatprep.mubr.bf16.mxu0 0
          %502 = vmatmul.mubr.bf16.gmra.mrb[0].mxu0 %v377
          %v503 = vpop.f32.mrb[0].mxu0
          %v504 = vadd.f32 0.0, %v503
          %v505 = vpop.f32.mrb[0].mxu0
          %v506 = vpop.f32.mrb[0].mxu0
          %v507 = vadd.f32 0.0, %v506
          %v508 = vpop.f32.mrb[0].mxu0
          %509 = vmatprep.mubr.bf16.mxu0 0
          %510 = vmatmul.mubr.bf16.gmra.mrb[0].mxu0 %v378
          %v511 = vpop.f32.mrb[0].mxu0
          %v512 = vadd.f32 0.0, %v511
          %v513 = vpop.f32.mrb[0].mxu0
          %v514 = vpop.f32.mrb[0].mxu0
          %v515 = vadd.f32 0.0, %v514
          %v516 = vpop.f32.mrb[0].mxu0
          %517 = vmatprep.mubr.bf16.mxu0 0
          %518 = vmatmul.mubr.bf16.gmra.mrb[0].mxu0 %v379
          %v519 = vpop.f32.mrb[0].mxu0
          %v520 = vadd.f32 0.0, %v519
          %v521 = vpop.f32.mrb[0].mxu0
          %v522 = vpop.f32.mrb[0].mxu0
          %v523 = vadd.f32 0.0, %v522
          %v524 = vpop.f32.mrb[0].mxu0
          %525 = vmatprep.mubr.bf16.mxu0 0
          %526 = vmatmul.mubr.bf16.gmra.mrb[0].mxu0 %v380
          %v527 = vpop.f32.mrb[0].mxu0
          %v528 = vadd.f32 0.0, %v527
          %v529 = vpop.f32.mrb[0].mxu0
          %v530 = vpop.f32.mrb[0].mxu0
          %v531 = vadd.f32 0.0, %v530
          %v532 = vpop.f32.mrb[0].mxu0
          %533 = vdwg.mxu0
          %v534 = vpack.c.bf16 %v475, %v472
          %v535 = vpack.c.bf16 %v483, %v480
          %v536 = vpack.c.bf16 %v491, %v488
          %v537 = vpack.c.bf16 %v499, %v496
          %v538 = vpack.c.bf16 %v507, %v504
          %v539 = vpack.c.bf16 %v515, %v512
          %v540 = vpack.c.bf16 %v523, %v520
          %v541 = vpack.c.bf16 %v531, %v528
          %v542 = vld [vmem:[#allocation8] sm:$0xf]
          %v543 = vld [vmem:[#allocation8 + $0x4] sm:$0xf]
          %v544 = vld [vmem:[#allocation8 + $0x8] sm:$0xf]
          %v545 = vld [vmem:[#allocation8 + $0xc] sm:$0xf]
          %v546 = vld [vmem:[#allocation8 + $0x10] sm:$0xf]
          %v547 = vld [vmem:[#allocation8 + $0x14] sm:$0xf]
          %v548 = vld [vmem:[#allocation8 + $0x18] sm:$0xf]
          %v549 = vld [vmem:[#allocation8 + $0x1c] sm:$0xf]
          %v550 = vld [vmem:[#allocation8 + $0x20] sm:$0xf]
          %v551 = vld [vmem:[#allocation8 + $0x24] sm:$0xf]
          %v552 = vld [vmem:[#allocation8 + $0x28] sm:$0xf]
          %v553 = vld [vmem:[#allocation8 + $0x2c] sm:$0xf]
          %v554 = vld [vmem:[#allocation8 + $0x30] sm:$0xf]
          %v555 = vld [vmem:[#allocation8 + $0x34] sm:$0xf]
          %v556 = vld [vmem:[#allocation8 + $0x38] sm:$0xf]
          %v557 = vld [vmem:[#allocation8 + $0x3c] sm:$0xf]
          %v558 = vld [vmem:[%s3] sm:$0x1]
          %v560 = vlaneseq
          %v561 = vshrl.u32 %v560, 7
          %v562 = vsub.s32 0, %v561
          %v563 = vrot.slane %v558, %v562
          %v581 = vunpack.c.l.b16 %v542
          %v582 = vunpack.c.l.b16 %v543
          %v583 = vunpack.c.l.b16 %v544
          %v584 = vunpack.c.l.b16 %v545
          %v585 = vunpack.c.l.b16 %v546
          %v586 = vunpack.c.l.b16 %v547
          %v587 = vunpack.c.l.b16 %v548
          %v588 = vunpack.c.l.b16 %v549
          %v589 = vunpack.c.l.b16 %v550
          %v590 = vunpack.c.l.b16 %v551
          %v591 = vunpack.c.l.b16 %v552
          %v592 = vunpack.c.l.b16 %v553
          %v593 = vunpack.c.l.b16 %v554
          %v594 = vunpack.c.l.b16 %v555
          %v595 = vunpack.c.l.b16 %v556
          %v596 = vunpack.c.l.b16 %v557
          %v597 = vpack.c.b16 %v582, %v581
          %v598 = vpack.c.b16 %v584, %v583
          %v599 = vpack.c.b16 %v586, %v585
          %v600 = vpack.c.b16 %v588, %v587
          %v601 = vpack.c.b16 %v590, %v589
          %v602 = vpack.c.b16 %v592, %v591
          %v603 = vpack.c.b16 %v594, %v593
          %v604 = vpack.c.b16 %v596, %v595
          %613 = vmatprep.subr.bf16.mxu0 0
          %614 = vmatpush1.bf16.msra.mxu0 %v597
          %615 = vmatprep.subr.bf16.mxu0 0
          %616 = vmatpush1.bf16.msra.mxu0 %v598
          %617 = vmatprep.subr.bf16.mxu0 0
          %618 = vmatpush1.bf16.msra.mxu0 %v599
          %619 = vmatprep.subr.bf16.mxu0 0
          %620 = vmatpush1.bf16.msra.mxu0 %v600
          %621 = vmatprep.subr.bf16.mxu0 0
          %622 = vmatpush1.bf16.msra.mxu0 %v601
          %623 = vmatprep.subr.bf16.mxu0 0
          %624 = vmatpush1.bf16.msra.mxu0 %v602
          %625 = vmatprep.subr.bf16.mxu0 0
          %626 = vmatpush1.bf16.msra.mxu0 %v603
          %627 = vmatprep.subr.bf16.mxu0 0
          %628 = vmatpush1.bf16.msra.mxu0 %v604
          %629 = vmatprep.subr.bf16.mxu0 0
          %630 = vmatpush1.bf16.msra.mxu0 0
          %631 = vmatprep.subr.bf16.mxu0 0
          %632 = vmatpush1.bf16.msra.mxu0 0
          %633 = vmatprep.subr.bf16.mxu0 0
          %634 = vmatpush1.bf16.msra.mxu0 0
          %635 = vmatprep.subr.bf16.mxu0 0
          %636 = vmatpush1.bf16.msra.mxu0 0
          %637 = vmatprep.subr.bf16.mxu0 0
          %638 = vmatpush1.bf16.msra.mxu0 0
          %639 = vmatprep.subr.bf16.mxu0 0
          %640 = vmatpush1.bf16.msra.mxu0 0
          %641 = vmatprep.subr.bf16.mxu0 0
          %642 = vmatpush1.bf16.msra.mxu0 0
          %643 = vmatprep.subr.bf16.mxu0 0
          %644 = vmatpush1.bf16.msra.mxu0 0
          %645 = vmatprep.mubr.bf16.mxu0 0
          %646 = vmatmul.mubr.bf16.gmra.mrb[0].mxu0 %v534
          %v647 = vpop.f32.mrb[0].mxu0
          %v648 = vadd.f32 %v563, %v647
          %v649 = vpop.f32.mrb[0].mxu0
          %v650 = vpop.f32.mrb[0].mxu0
          %v651 = vadd.f32 %v563, %v650
          %v652 = vpop.f32.mrb[0].mxu0
          %653 = vmatprep.mubr.bf16.mxu0 0
          %654 = vmatmul.mubr.bf16.gmra.mrb[0].mxu0 %v535
          %v655 = vpop.f32.mrb[0].mxu0
          %v656 = vadd.f32 %v563, %v655
          %v657 = vpop.f32.mrb[0].mxu0
          %v658 = vpop.f32.mrb[0].mxu0
          %v659 = vadd.f32 %v563, %v658
          %v660 = vpop.f32.mrb[0].mxu0
          %661 = vmatprep.mubr.bf16.mxu0 0
          %662 = vmatmul.mubr.bf16.gmra.mrb[0].mxu0 %v536
          %v663 = vpop.f32.mrb[0].mxu0
          %v664 = vadd.f32 %v563, %v663
          %v665 = vpop.f32.mrb[0].mxu0
          %v666 = vpop.f32.mrb[0].mxu0
          %v667 = vadd.f32 %v563, %v666
          %v668 = vpop.f32.mrb[0].mxu0
          %669 = vmatprep.mubr.bf16.mxu0 0
          %670 = vmatmul.mubr.bf16.gmra.mrb[0].mxu0 %v537
          %v671 = vpop.f32.mrb[0].mxu0
          %v672 = vadd.f32 %v563, %v671
          %v673 = vpop.f32.mrb[0].mxu0
          %v674 = vpop.f32.mrb[0].mxu0
          %v675 = vadd.f32 %v563, %v674
          %v676 = vpop.f32.mrb[0].mxu0
          %677 = vmatprep.mubr.bf16.mxu0 0
          %678 = vmatmul.mubr.bf16.gmra.mrb[0].mxu0 %v538
          %v679 = vpop.f32.mrb[0].mxu0
          %v680 = vadd.f32 %v563, %v679
          %v681 = vpop.f32.mrb[0].mxu0
          %v682 = vpop.f32.mrb[0].mxu0
          %v683 = vadd.f32 %v563, %v682
          %v684 = vpop.f32.mrb[0].mxu0
          %685 = vmatprep.mubr.bf16.mxu0 0
          %686 = vmatmul.mubr.bf16.gmra.mrb[0].mxu0 %v539
          %v687 = vpop.f32.mrb[0].mxu0
          %v688 = vadd.f32 %v563, %v687
          %v689 = vpop.f32.mrb[0].mxu0
          %v690 = vpop.f32.mrb[0].mxu0
          %v691 = vadd.f32 %v563, %v690
          %v692 = vpop.f32.mrb[0].mxu0
          %693 = vmatprep.mubr.bf16.mxu0 0
          %694 = vmatmul.mubr.bf16.gmra.mrb[0].mxu0 %v540
          %v695 = vpop.f32.mrb[0].mxu0
          %v696 = vadd.f32 %v563, %v695
          %v697 = vpop.f32.mrb[0].mxu0
          %v698 = vpop.f32.mrb[0].mxu0
          %v699 = vadd.f32 %v563, %v698
          %v700 = vpop.f32.mrb[0].mxu0
          %701 = vmatprep.mubr.bf16.mxu0 0
          %702 = vmatmul.mubr.bf16.gmra.mrb[0].mxu0 %v541
          %v703 = vpop.f32.mrb[0].mxu0
          %v704 = vadd.f32 %v563, %v703
          %v705 = vpop.f32.mrb[0].mxu0
          %v706 = vpop.f32.mrb[0].mxu0
          %v707 = vadd.f32 %v563, %v706
          %v708 = vpop.f32.mrb[0].mxu0
          %709 = vdwg.mxu0
          %v710 = vmax.f32 %v648, 0.0
          %v711 = vmax.f32 %v651, 0.0
          %v712 = vmax.f32 %v656, 0.0
          %v713 = vmax.f32 %v659, 0.0
          %v714 = vmax.f32 %v664, 0.0
          %v715 = vmax.f32 %v667, 0.0
          %v716 = vmax.f32 %v672, 0.0
          %v717 = vmax.f32 %v675, 0.0
          %v718 = vmax.f32 %v680, 0.0
          %v719 = vmax.f32 %v683, 0.0
          %v720 = vmax.f32 %v688, 0.0
          %v721 = vmax.f32 %v691, 0.0
          %v722 = vmax.f32 %v696, 0.0
          %v723 = vmax.f32 %v699, 0.0
          %v724 = vmax.f32 %v704, 0.0
          %v725 = vmax.f32 %v707, 0.0
          %v726 = vpack.c.bf16 %v711, %v710
          %v727 = vpack.c.bf16 %v713, %v712
          %v728 = vpack.c.bf16 %v715, %v714
          %v729 = vpack.c.bf16 %v717, %v716
          %v730 = vpack.c.bf16 %v719, %v718
          %v731 = vpack.c.bf16 %v721, %v720
          %v732 = vpack.c.bf16 %v723, %v722
          %v733 = vpack.c.bf16 %v725, %v724
          %v734 = vld [vmem:[#allocation9] sm:$0xf]
          %v735 = vld [vmem:[#allocation9 + $0x4] sm:$0xf]
          %v736 = vld [vmem:[#allocation9 + $0x8] sm:$0xf]
          %v737 = vld [vmem:[#allocation9 + $0xc] sm:$0xf]
          %v738 = vld [vmem:[#allocation9 + $0x10] sm:$0xf]
          %v739 = vld [vmem:[#allocation9 + $0x14] sm:$0xf]
          %v740 = vld [vmem:[#allocation9 + $0x18] sm:$0xf]
          %v741 = vld [vmem:[#allocation9 + $0x1c] sm:$0xf]
          %v742 = vld [vmem:[#allocation9 + $0x20] sm:$0xf]
          %v743 = vld [vmem:[#allocation9 + $0x24] sm:$0xf]
          %v744 = vld [vmem:[#allocation9 + $0x28] sm:$0xf]
          %v745 = vld [vmem:[#allocation9 + $0x2c] sm:$0xf]
          %v746 = vld [vmem:[#allocation9 + $0x30] sm:$0xf]
          %v747 = vld [vmem:[#allocation9 + $0x34] sm:$0xf]
          %v748 = vld [vmem:[#allocation9 + $0x38] sm:$0xf]
          %v749 = vld [vmem:[#allocation9 + $0x3c] sm:$0xf]
          %v766 = vunpack.c.l.b16 %v734
          %v767 = vunpack.c.l.b16 %v735
          %v768 = vunpack.c.l.b16 %v736
          %v769 = vunpack.c.l.b16 %v737
          %v770 = vunpack.c.l.b16 %v738
          %v771 = vunpack.c.l.b16 %v739
          %v772 = vunpack.c.l.b16 %v740
          %v773 = vunpack.c.l.b16 %v741
          %v774 = vunpack.c.l.b16 %v742
          %v775 = vunpack.c.l.b16 %v743
          %v776 = vunpack.c.l.b16 %v744
          %v777 = vunpack.c.l.b16 %v745
          %v778 = vunpack.c.l.b16 %v746
          %v779 = vunpack.c.l.b16 %v747
          %v780 = vunpack.c.l.b16 %v748
          %v781 = vunpack.c.l.b16 %v749
          %v782 = vpack.c.b16 %v767, %v766
          %v783 = vpack.c.b16 %v769, %v768
          %v784 = vpack.c.b16 %v771, %v770
          %v785 = vpack.c.b16 %v773, %v772
          %v786 = vpack.c.b16 %v775, %v774
          %v787 = vpack.c.b16 %v777, %v776
          %v788 = vpack.c.b16 %v779, %v778
          %v789 = vpack.c.b16 %v781, %v780
          %798 = vmatprep.subr.bf16.mxu0 0
          %799 = vmatpush1.bf16.msra.mxu0 %v782
          %800 = vmatprep.subr.bf16.mxu0 0
          %801 = vmatpush1.bf16.msra.mxu0 %v783
          %802 = vmatprep.subr.bf16.mxu0 0
          %803 = vmatpush1.bf16.msra.mxu0 %v784
          %804 = vmatprep.subr.bf16.mxu0 0
          %805 = vmatpush1.bf16.msra.mxu0 %v785
          %806 = vmatprep.subr.bf16.mxu0 0
          %807 = vmatpush1.bf16.msra.mxu0 %v786
          %808 = vmatprep.subr.bf16.mxu0 0
          %809 = vmatpush1.bf16.msra.mxu0 %v787
          %810 = vmatprep.subr.bf16.mxu0 0
          %811 = vmatpush1.bf16.msra.mxu0 %v788
          %812 = vmatprep.subr.bf16.mxu0 0
          %813 = vmatpush1.bf16.msra.mxu0 %v789
          %814 = vmatprep.subr.bf16.mxu0 0
          %815 = vmatpush1.bf16.msra.mxu0 0
          %816 = vmatprep.subr.bf16.mxu0 0
          %817 = vmatpush1.bf16.msra.mxu0 0
          %818 = vmatprep.subr.bf16.mxu0 0
          %819 = vmatpush1.bf16.msra.mxu0 0
          %820 = vmatprep.subr.bf16.mxu0 0
          %821 = vmatpush1.bf16.msra.mxu0 0
          %822 = vmatprep.subr.bf16.mxu0 0
          %823 = vmatpush1.bf16.msra.mxu0 0
          %824 = vmatprep.subr.bf16.mxu0 0
          %825 = vmatpush1.bf16.msra.mxu0 0
          %826 = vmatprep.subr.bf16.mxu0 0
          %827 = vmatpush1.bf16.msra.mxu0 0
          %828 = vmatprep.subr.bf16.mxu0 0
          %829 = vmatpush1.bf16.msra.mxu0 0
          %830 = vmatprep.mubr.bf16.mxu0 0
          %831 = vmatmul.mubr.bf16.gmra.mrb[0].mxu0 %v726
          %v832 = vpop.f32.mrb[0].mxu0
          %v833 = vadd.f32 0.0, %v832
          %v834 = vpop.f32.mrb[0].mxu0
          %v835 = vpop.f32.mrb[0].mxu0
          %v836 = vadd.f32 0.0, %v835
          %v837 = vpop.f32.mrb[0].mxu0
          %838 = vmatprep.mubr.bf16.mxu0 0
          %839 = vmatmul.mubr.bf16.gmra.mrb[0].mxu0 %v727
          %v840 = vpop.f32.mrb[0].mxu0
          %v841 = vadd.f32 0.0, %v840
          %v842 = vpop.f32.mrb[0].mxu0
          %v843 = vpop.f32.mrb[0].mxu0
          %v844 = vadd.f32 0.0, %v843
          %v845 = vpop.f32.mrb[0].mxu0
          %846 = vmatprep.mubr.bf16.mxu0 0
          %847 = vmatmul.mubr.bf16.gmra.mrb[0].mxu0 %v728
          %v848 = vpop.f32.mrb[0].mxu0
          %v849 = vadd.f32 0.0, %v848
          %v850 = vpop.f32.mrb[0].mxu0
          %v851 = vpop.f32.mrb[0].mxu0
          %v852 = vadd.f32 0.0, %v851
          %v853 = vpop.f32.mrb[0].mxu0
          %854 = vmatprep.mubr.bf16.mxu0 0
          %855 = vmatmul.mubr.bf16.gmra.mrb[0].mxu0 %v729
          %v856 = vpop.f32.mrb[0].mxu0
          %v857 = vadd.f32 0.0, %v856
          %v858 = vpop.f32.mrb[0].mxu0
          %v859 = vpop.f32.mrb[0].mxu0
          %v860 = vadd.f32 0.0, %v859
          %v861 = vpop.f32.mrb[0].mxu0
          %862 = vmatprep.mubr.bf16.mxu0 0
          %863 = vmatmul.mubr.bf16.gmra.mrb[0].mxu0 %v730
          %v864 = vpop.f32.mrb[0].mxu0
          %v865 = vadd.f32 0.0, %v864
          %v866 = vpop.f32.mrb[0].mxu0
          %v867 = vpop.f32.mrb[0].mxu0
          %v868 = vadd.f32 0.0, %v867
          %v869 = vpop.f32.mrb[0].mxu0
          %870 = vmatprep.mubr.bf16.mxu0 0
          %871 = vmatmul.mubr.bf16.gmra.mrb[0].mxu0 %v731
          %v872 = vpop.f32.mrb[0].mxu0
          %v873 = vadd.f32 0.0, %v872
          %v874 = vpop.f32.mrb[0].mxu0
          %v875 = vpop.f32.mrb[0].mxu0
          %v876 = vadd.f32 0.0, %v875
          %v877 = vpop.f32.mrb[0].mxu0
          %878 = vmatprep.mubr.bf16.mxu0 0
          %879 = vmatmul.mubr.bf16.gmra.mrb[0].mxu0 %v732
          %v880 = vpop.f32.mrb[0].mxu0
          %v881 = vadd.f32 0.0, %v880
          %v882 = vpop.f32.mrb[0].mxu0
          %v883 = vpop.f32.mrb[0].mxu0
          %v884 = vadd.f32 0.0, %v883
          %v885 = vpop.f32.mrb[0].mxu0
          %886 = vmatprep.mubr.bf16.mxu0 0
          %887 = vmatmul.mubr.bf16.gmra.mrb[0].mxu0 %v733
          %v888 = vpop.f32.mrb[0].mxu0
          %v889 = vadd.f32 0.0, %v888
          %v890 = vpop.f32.mrb[0].mxu0
          %v891 = vpop.f32.mrb[0].mxu0
          %v892 = vadd.f32 0.0, %v891
          %v893 = vpop.f32.mrb[0].mxu0
          %894 = vdwg.mxu0
          %s895 = smul.u32 %s26, 128
          %v896 = vpack.c.bf16 %v836, %v833
          %v897 = vpack.c.bf16 %v844, %v841
          %v898 = vpack.c.bf16 %v852, %v849
          %v899 = vpack.c.bf16 %v860, %v857
          %v900 = vpack.c.bf16 %v868, %v865
          %v901 = vpack.c.bf16 %v876, %v873
          %v902 = vpack.c.bf16 %v884, %v881
          %v903 = vpack.c.bf16 %v892, %v889
          %s904 = sshra.s32 %s895, 4
          %s905 = sand.u32 %s895, 15
          %s906 = smul.addr %s904, 8
          %s907 = scalar_lea.vmem [#allocation2], %s906
          %908 = vst [vmem:[%s907] sm:$0xff] %v896
          %909 = vst [vmem:[%s907 + $0x8] sm:$0xff] %v897
          %910 = vst [vmem:[%s907 + $0x10] sm:$0xff] %v898
          %911 = vst [vmem:[%s907 + $0x18] sm:$0xff] %v899
          %912 = vst [vmem:[%s907 + $0x20] sm:$0xff] %v900
          %913 = vst [vmem:[%s907 + $0x28] sm:$0xff] %v901
          %914 = vst [vmem:[%s907 + $0x30] sm:$0xff] %v902
          %915 = vst [vmem:[%s907 + $0x38] sm:$0xff] %v903
          %916 = vst [vmem:[#allocation11] sm:$0xff] 0.0
          %917 = vst [vmem:[#allocation11 + $0x8] sm:$0xff] 0.0
          %918 = vst [vmem:[#allocation11 + $0x10] sm:$0xff] 0.0
          %919 = vst [vmem:[#allocation11 + $0x18] sm:$0xff] 0.0
          %920 = vst [vmem:[#allocation11 + $0x20] sm:$0xff] 0.0
          %921 = vst [vmem:[#allocation11 + $0x28] sm:$0xff] 0.0
          %922 = vst [vmem:[#allocation11 + $0x30] sm:$0xff] 0.0
          %923 = vst [vmem:[#allocation11 + $0x38] sm:$0xff] 0.0
          %924 = vst [vmem:[#allocation11 + $0x40] sm:$0xff] 0.0
          %925 = vst [vmem:[#allocation11 + $0x48] sm:$0xff] 0.0
          %926 = vst [vmem:[#allocation11 + $0x50] sm:$0xff] 0.0
          %927 = vst [vmem:[#allocation11 + $0x58] sm:$0xff] 0.0
          %928 = vst [vmem:[#allocation11 + $0x60] sm:$0xff] 0.0
          %929 = vst [vmem:[#allocation11 + $0x68] sm:$0xff] 0.0
          %930 = vst [vmem:[#allocation11 + $0x70] sm:$0xff] 0.0
          %931 = vst [vmem:[#allocation11 + $0x78] sm:$0xff] 0.0
        $region64: #{tpu_custom_call.1} parent=43 // pred_fallthru
          _
        %p932 = scmp.eq.s32.totalorder %s25, 1
        // Predicated region
        $region65: #{tpu_custom_call.1} parent=43 // pred_check
          %p933 = pneg %p932
        $region66: #{tpu_custom_call.1} parent=43 // pred_check_branch
          %935 = sbr.rel (%p933) target = $region68
        $region67: #{tpu_custom_call.1} parent=43 // pred_region
          %v936 = vld [vmem:[#allocation3] sm:$0xf]
          %v937 = vld [vmem:[#allocation3 + $0x4] sm:$0xf]
          %v938 = vld [vmem:[#allocation3 + $0x8] sm:$0xf]
          %v939 = vld [vmem:[#allocation3 + $0xc] sm:$0xf]
          %v940 = vld [vmem:[#allocation3 + $0x10] sm:$0xf]
          %v941 = vld [vmem:[#allocation3 + $0x14] sm:$0xf]
          %v942 = vld [vmem:[#allocation3 + $0x18] sm:$0xf]
          %v943 = vld [vmem:[#allocation3 + $0x1c] sm:$0xf]
          %v944 = vld [vmem:[#allocation3 + $0x20] sm:$0xf]
          %v945 = vld [vmem:[#allocation3 + $0x24] sm:$0xf]
          %v946 = vld [vmem:[#allocation3 + $0x28] sm:$0xf]
          %v947 = vld [vmem:[#allocation3 + $0x2c] sm:$0xf]
          %v948 = vld [vmem:[#allocation3 + $0x30] sm:$0xf]
          %v949 = vld [vmem:[#allocation3 + $0x34] sm:$0xf]
          %v950 = vld [vmem:[#allocation3 + $0x38] sm:$0xf]
          %v951 = vld [vmem:[#allocation3 + $0x3c] sm:$0xf]
          %v952 = vld [vmem:[#allocation2] sm:$0xff]
          %v953 = vld [vmem:[#allocation2 + $0x8] sm:$0xff]
          %v954 = vld [vmem:[#allocation2 + $0x10] sm:$0xff]
          %v955 = vld [vmem:[#allocation2 + $0x18] sm:$0xff]
          %v956 = vld [vmem:[#allocation2 + $0x20] sm:$0xff]
          %v957 = vld [vmem:[#allocation2 + $0x28] sm:$0xff]
          %v958 = vld [vmem:[#allocation2 + $0x30] sm:$0xff]
          %v959 = vld [vmem:[#allocation2 + $0x38] sm:$0xff]
          %v960 = vld [vmem:[%s5] sm:$0x1]
          %v962 = vlaneseq
          %v963 = vshrl.u32 %v962, 7
          %v964 = vsub.s32 0, %v963
          %v965 = vrot.slane %v960, %v964
          %v983 = vunpack.c.l.b16 %v936
          %v984 = vunpack.c.l.b16 %v937
          %v985 = vunpack.c.l.b16 %v938
          %v986 = vunpack.c.l.b16 %v939
          %v987 = vunpack.c.l.b16 %v940
          %v988 = vunpack.c.l.b16 %v941
          %v989 = vunpack.c.l.b16 %v942
          %v990 = vunpack.c.l.b16 %v943
          %v991 = vunpack.c.l.b16 %v944
          %v992 = vunpack.c.l.b16 %v945
          %v993 = vunpack.c.l.b16 %v946
          %v994 = vunpack.c.l.b16 %v947
          %v995 = vunpack.c.l.b16 %v948
          %v996 = vunpack.c.l.b16 %v949
          %v997 = vunpack.c.l.b16 %v950
          %v998 = vunpack.c.l.b16 %v951
          %v999 = vpack.c.b16 %v984, %v983
          %v1000 = vpack.c.b16 %v986, %v985
          %v1001 = vpack.c.b16 %v988, %v987
          %v1002 = vpack.c.b16 %v990, %v989
          %v1003 = vpack.c.b16 %v992, %v991
          %v1004 = vpack.c.b16 %v994, %v993
          %v1005 = vpack.c.b16 %v996, %v995
          %v1006 = vpack.c.b16 %v998, %v997
          %1015 = vmatprep.subr.bf16.mxu0 0
          %1016 = vmatpush1.bf16.msra.mxu0 %v952
          %1017 = vmatprep.subr.bf16.mxu0 0
          %1018 = vmatpush1.bf16.msra.mxu0 %v953
          %1019 = vmatprep.subr.bf16.mxu0 0
          %1020 = vmatpush1.bf16.msra.mxu0 %v954
          %1021 = vmatprep.subr.bf16.mxu0 0
          %1022 = vmatpush1.bf16.msra.mxu0 %v955
          %1023 = vmatprep.subr.bf16.mxu0 0
          %1024 = vmatpush1.bf16.msra.mxu0 %v956
          %1025 = vmatprep.subr.bf16.mxu0 0
          %1026 = vmatpush1.bf16.msra.mxu0 %v957
          %1027 = vmatprep.subr.bf16.mxu0 0
          %1028 = vmatpush1.bf16.msra.mxu0 %v958
          %1029 = vmatprep.subr.bf16.mxu0 0
          %1030 = vmatpush1.bf16.msra.mxu0 %v959
          %1031 = vmatprep.subr.bf16.mxu0 0
          %1032 = vmatpush1.bf16.msra.mxu0 0
          %1033 = vmatprep.subr.bf16.mxu0 0
          %1034 = vmatpush1.bf16.msra.mxu0 0
          %1035 = vmatprep.subr.bf16.mxu0 0
          %1036 = vmatpush1.bf16.msra.mxu0 0
          %1037 = vmatprep.subr.bf16.mxu0 0
          %1038 = vmatpush1.bf16.msra.mxu0 0
          %1039 = vmatprep.subr.bf16.mxu0 0
          %1040 = vmatpush1.bf16.msra.mxu0 0
          %1041 = vmatprep.subr.bf16.mxu0 0
          %1042 = vmatpush1.bf16.msra.mxu0 0
          %1043 = vmatprep.subr.bf16.mxu0 0
          %1044 = vmatpush1.bf16.msra.mxu0 0
          %1045 = vmatprep.subr.bf16.mxu0 0
          %1046 = vmatpush1.bf16.msra.mxu0 0
          %1047 = vmatprep.mubr.bf16.mxu0 0
          %1048 = vmatmul.mubr.bf16.gmra.mrb[0].mxu0 %v999
          %v1049 = vpop.f32.mrb[0].mxu0
          %v1050 = vadd.f32 %v965, %v1049
          %v1051 = vpop.f32.mrb[0].mxu0
          %v1052 = vpop.f32.mrb[0].mxu0
          %v1053 = vadd.f32 %v965, %v1052
          %v1054 = vpop.f32.mrb[0].mxu0
          %1055 = vmatprep.mubr.bf16.mxu0 0
          %1056 = vmatmul.mubr.bf16.gmra.mrb[0].mxu0 %v1000
          %v1057 = vpop.f32.mrb[0].mxu0
          %v1058 = vadd.f32 %v965, %v1057
          %v1059 = vpop.f32.mrb[0].mxu0
          %v1060 = vpop.f32.mrb[0].mxu0
          %v1061 = vadd.f32 %v965, %v1060
          %v1062 = vpop.f32.mrb[0].mxu0
          %1063 = vmatprep.mubr.bf16.mxu0 0
          %1064 = vmatmul.mubr.bf16.gmra.mrb[0].mxu0 %v1001
          %v1065 = vpop.f32.mrb[0].mxu0
          %v1066 = vadd.f32 %v965, %v1065
          %v1067 = vpop.f32.mrb[0].mxu0
          %v1068 = vpop.f32.mrb[0].mxu0
          %v1069 = vadd.f32 %v965, %v1068
          %v1070 = vpop.f32.mrb[0].mxu0
          %1071 = vmatprep.mubr.bf16.mxu0 0
          %1072 = vmatmul.mubr.bf16.gmra.mrb[0].mxu0 %v1002
          %v1073 = vpop.f32.mrb[0].mxu0
          %v1074 = vadd.f32 %v965, %v1073
          %v1075 = vpop.f32.mrb[0].mxu0
          %v1076 = vpop.f32.mrb[0].mxu0
          %v1077 = vadd.f32 %v965, %v1076
          %v1078 = vpop.f32.mrb[0].mxu0
          %1079 = vmatprep.mubr.bf16.mxu0 0
          %1080 = vmatmul.mubr.bf16.gmra.mrb[0].mxu0 %v1003
          %v1081 = vpop.f32.mrb[0].mxu0
          %v1082 = vadd.f32 %v965, %v1081
          %v1083 = vpop.f32.mrb[0].mxu0
          %v1084 = vpop.f32.mrb[0].mxu0
          %v1085 = vadd.f32 %v965, %v1084
          %v1086 = vpop.f32.mrb[0].mxu0
          %1087 = vmatprep.mubr.bf16.mxu0 0
          %1088 = vmatmul.mubr.bf16.gmra.mrb[0].mxu0 %v1004
          %v1089 = vpop.f32.mrb[0].mxu0
          %v1090 = vadd.f32 %v965, %v1089
          %v1091 = vpop.f32.mrb[0].mxu0
          %v1092 = vpop.f32.mrb[0].mxu0
          %v1093 = vadd.f32 %v965, %v1092
          %v1094 = vpop.f32.mrb[0].mxu0
          %1095 = vmatprep.mubr.bf16.mxu0 0
          %1096 = vmatmul.mubr.bf16.gmra.mrb[0].mxu0 %v1005
          %v1097 = vpop.f32.mrb[0].mxu0
          %v1098 = vadd.f32 %v965, %v1097
          %v1099 = vpop.f32.mrb[0].mxu0
          %v1100 = vpop.f32.mrb[0].mxu0
          %v1101 = vadd.f32 %v965, %v1100
          %v1102 = vpop.f32.mrb[0].mxu0
          %1103 = vmatprep.mubr.bf16.mxu0 0
          %1104 = vmatmul.mubr.bf16.gmra.mrb[0].mxu0 %v1006
          %v1105 = vpop.f32.mrb[0].mxu0
          %v1106 = vadd.f32 %v965, %v1105
          %v1107 = vpop.f32.mrb[0].mxu0
          %v1108 = vpop.f32.mrb[0].mxu0
          %v1109 = vadd.f32 %v965, %v1108
          %v1110 = vpop.f32.mrb[0].mxu0
          %1111 = vdwg.mxu0
          %1112 = vst [vmem:[#allocation11] sm:$0xff] %v1050
          %1113 = vst [vmem:[#allocation11 + $0x8] sm:$0xff] %v1053
          %1114 = vst [vmem:[#allocation11 + $0x10] sm:$0xff] %v1058
          %1115 = vst [vmem:[#allocation11 + $0x18] sm:$0xff] %v1061
          %1116 = vst [vmem:[#allocation11 + $0x20] sm:$0xff] %v1066
          %1117 = vst [vmem:[#allocation11 + $0x28] sm:$0xff] %v1069
          %1118 = vst [vmem:[#allocation11 + $0x30] sm:$0xff] %v1074
          %1119 = vst [vmem:[#allocation11 + $0x38] sm:$0xff] %v1077
          %1120 = vst [vmem:[#allocation11 + $0x40] sm:$0xff] %v1082
          %1121 = vst [vmem:[#allocation11 + $0x48] sm:$0xff] %v1085
          %1122 = vst [vmem:[#allocation11 + $0x50] sm:$0xff] %v1090
          %1123 = vst [vmem:[#allocation11 + $0x58] sm:$0xff] %v1093
          %1124 = vst [vmem:[#allocation11 + $0x60] sm:$0xff] %v1098
          %1125 = vst [vmem:[#allocation11 + $0x68] sm:$0xff] %v1101
          %1126 = vst [vmem:[#allocation11 + $0x70] sm:$0xff] %v1106
          %1127 = vst [vmem:[#allocation11 + $0x78] sm:$0xff] %v1109
        $region68: #{tpu_custom_call.1} parent=43 // pred_fallthru
          _
        // Predicated region
        $region69: #{tpu_custom_call.1} parent=43 // pred_check
          %p1128 = pneg %p182
        $region70: #{tpu_custom_call.1} parent=43 // pred_check_branch
          %1130 = sbr.rel (%p1128) target = $region72
        $region71: #{tpu_custom_call.1} parent=43 // pred_region
          %s1131 = smul.u32 16, %s26
          %s1133 = ssub.s32 2048, 2048
          %1134 = vsyncadd [#allocation5], %s1133
          %s1135 = smul.addr %s1131, 128
          %s1136 = scalar_lea.hbm %s6, %s1135
          %s1137 = sshll.u32 [#allocation11], 4
          %s1138 = int_to_ptr.vmem [resolvable:$true] %s1137
          %1143 = dma.vmem_to_hbm [thread:$0]  %s1138, 2048, %s1136, [#allocation5], 128, 128, 8
        $region72: #{tpu_custom_call.1} parent=43 // pred_fallthru
          _
        // Predicated region
        $region73: #{tpu_custom_call.1} parent=43 // pred_check
          %p1144 = pneg %p182
        $region74: #{tpu_custom_call.1} parent=43 // pred_check_branch
          %1146 = sbr.rel (%p1144) target = $region76
        $region75: #{tpu_custom_call.1} parent=43 // pred_region
          %1147 = dma.done [#allocation5], 2048
        $region76: #{tpu_custom_call.1} parent=43 // pred_fallthru
          _
      $region44: #{tpu_custom_call.1} parent=5 // pred_fallthru
        _
      %p1148 = scmp.le.s32.totalorder 2, %s16
      // Predicated region
      $region77: #{tpu_custom_call.1} parent=5 // pred_check
        %p1149 = pneg %p1148
      $region78: #{tpu_custom_call.1} parent=5 // pred_check_branch
        %1151 = sbr.rel (%p1149) target = $region80
      $region79: #{tpu_custom_call.1} parent=5 // pred_region
        %s1152 = ssub.s32 %s16, 2
      $region80: #{tpu_custom_call.1} parent=5 // pred_fallthru
        _
    $region6: #{tpu_custom_call.1} parent=1 // loop_footer
      %s20 = sadd.s32 1, %s16
    $region7: #{tpu_custom_call.1} parent=1 // loop_footer_branch
      %15 = sbr.rel target = $region3
    $region8: #{tpu_custom_call.1} parent=1 // loop_exit
      _
    %1153 = vsyncpa [#allocation4], 1
    %s1154 = scalar_lea.sflag [#allocation4], 1
    %1155 = vsyncpa %s1154, 1
    %1156 = vsyncpa [#allocation7], 1
    %1157 = vsyncpa [#allocation10], 1
    %1158 = vsyncpa [#allocation5], 1
    %s1159 = scalar_lea.sflag [#allocation5], 1
    %1160 = vsyncpa %s1159, 1

</llo_original>
